<compile_context>
chip_gen: v6e
topology: v6e:2x2x1
jax: 0.10.0
libtpu: 0.0.40
codegen_flags: <defaults>
</compile_context>

<pallas_src>
import math

import jax
import jax.numpy as jnp
from jax.experimental import pallas as pl

# ---------------- model dims (small, consistent with the module) ----------------
B = 2           # batch
S = 8           # sequence length
D = 32          # d_model (= H * DH, so head-major columns span exactly D lanes)
H = 4           # nhead
DH = D // H     # head_dim
F = 64          # dim_feedforward
N = B * S       # total rows processed in the single kernel step
GW = 5 * D      # width of fused [q | q_rot | k | k_rot | v] projection = 160
EPS = 1e-5


def _layernorm(v, w, b):
    mu = jnp.mean(v, axis=-1, keepdims=True)
    var = jnp.mean((v - mu) ** 2, axis=-1, keepdims=True)
    return (v - mu) * jax.lax.rsqrt(var + EPS) * w + b


# ------------------------------- the fused kernel -------------------------------
def encoder_layer_kernel(x_ref, w_all_ref, wout_ref, w1_ref, w2_ref, vec_ref, tab_ref, o_ref):
    bf16 = jnp.bfloat16
    x = x_ref[...].astype(jnp.float32)                            # (N, D)

    vec = vec_ref[...]                                            # (8, GW) f32 slab
    ln1w, ln1b = vec[0:1, :D], vec[1:2, :D]
    ln2w, ln2b = vec[2:3, :D], vec[3:4, :D]
    bout, b2 = vec[4:5, :D], vec[5:6, :D]
    b_all = vec[6:7, :]                                           # (1, GW)
    b1 = vec[7:8, :2 * F]                                         # (1, 2F)

    tab = tab_ref[...]                                            # (N, 128) f32 slab
    cos = tab[:, 0:D]                                             # (N, D) per-head tiled
    sin = tab[:, D:2 * D]
    mask = tab[:, 2 * D:2 * D + N]                                # (N, N) additive batch mask

    # ---------------- self-attention block (pre-norm) ----------------
    y1 = _layernorm(x, ln1w, ln1b)
    # Single wide fused projection: 1 MXU push, 160 output lanes.
    proj = jnp.dot(y1.astype(bf16), w_all_ref[...],
                   preferred_element_type=jnp.float32) + b_all    # (N, 160)

    # RoPE: rotate-half permutation + 1/sqrt(DH) folded into q_rot/k_rot weight columns
    # host-side -> two 32-lane-wide elementwise FMAs here.
    q2d = proj[:, 0 * D:1 * D] * cos + proj[:, 1 * D:2 * D] * sin  # (N, D) f32
    k2d = proj[:, 2 * D:3 * D] * cos + proj[:, 3 * D:4 * D] * sin
    v2d = proj[:, 4 * D:5 * D]

    q16, k16, v16 = q2d.astype(bf16), k2d.astype(bf16), v2d.astype(bf16)

    # Per-head attention (static unrolled loop; same MXU push count as a batched einsum).
    o_heads = []
    for h in range(H):
        sl = slice(h * DH, (h + 1) * DH)
        s = jnp.einsum("nd,md->nm", q16[:, sl], k16[:, sl],
                       preferred_element_type=jnp.float32) + mask  # (N, N) f32
        m = jnp.max(s, axis=-1, keepdims=True)
        e = jnp.exp(s - m)
        p = e * pl.reciprocal(jnp.sum(e, axis=-1, keepdims=True), approx=True)
        o_heads.append(jnp.dot(p.astype(bf16), v16[:, sl],
                               preferred_element_type=jnp.float32))  # (N, DH)
    o_cat = jnp.concatenate(o_heads, axis=-1)                      # (N, D) lane concat

    # Output projection: one (N,32)@(32,32) push (no per-head accumulation chain).
    attn = jnp.dot(o_cat.astype(bf16), wout_ref[...],
                   preferred_element_type=jnp.float32) + bout
    x2 = x + attn                                                  # residual 1 (dropout = identity)

    # ---------------- SwiGLU feed-forward block (pre-norm) ----------------
    y2 = _layernorm(x2, ln2w, ln2b)
    hff = jnp.dot(y2.astype(bf16), w1_ref[...],
                  preferred_element_type=jnp.float32) + b1         # (N, 2F) = 128 lanes, 1 push
    a, g = hff[:, :F], hff[:, F:]
    gated = a * jax.nn.sigmoid(a) * g                              # SiLU(a) * g, f32
    ff = jnp.dot(gated.astype(bf16), w2_ref[...],
                 preferred_element_type=jnp.float32) + b2

    o_ref[...] = (x2 + ff).astype(o_ref.dtype)                     # residual 2


# ------------------------------- wrapper -------------------------------
@jax.jit
def transformer_encoder_layer(x, kp):
    args = (x.reshape(N, D), kp["w_all"], kp["wout"], kp["w1"], kp["w2"],
            kp["vecs"], kp["tables"])
    flops = (2 * N * D * GW            # fused q/q_rot/k/k_rot/v projection
             + 2 * H * N * N * DH * 2  # scores + PV
             + 2 * N * D * D           # output projection
             + 2 * N * D * 2 * F       # SwiGLU up
             + 2 * N * F * D)          # SwiGLU down
    transcendentals = H * N * N + N * F + 2 * N + H * N   # exp, sigmoid, rsqrt, reciprocal
    bytes_accessed = sum(int(a.size) * a.dtype.itemsize for a in args) + N * D * 4

    out2d = pl.pallas_call(
        encoder_layer_kernel,
        out_shape=jax.ShapeDtypeStruct((N, D), x.dtype),
        cost_estimate=pl.CostEstimate(flops=flops,
                                      transcendentals=transcendentals,
                                      bytes_accessed=bytes_accessed),
    )(*args)
    return out2d.reshape(B, S, D)


# -------- deterministic parameter init (xavier_uniform / zeros / ones), module layout --------
def xavier_uniform(key, fan_in, fan_out):
    bound = math.sqrt(6.0 / (fan_in + fan_out))
    return jax.random.uniform(key, (fan_in, fan_out), jnp.float32, -bound, bound)


def init_params(key):
    ks = jax.random.split(key, 4)
    return {
        "ln1_w": jnp.ones((1, D), jnp.float32),
        "ln1_b": jnp.zeros((1, D), jnp.float32),
        "wqkv": xavier_uniform(ks[0], D, 3 * D),
        "bqkv": jnp.zeros((1, 3 * D), jnp.float32),
        "wout": xavier_uniform(ks[1], D, D),
        "bout": jnp.zeros((1, D), jnp.float32),
        "ln2_w": jnp.ones((1, D), jnp.float32),
        "ln2_b": jnp.zeros((1, D), jnp.float32),
        "w1": xavier_uniform(ks[2], D, 2 * F),
        "b1": jnp.zeros((1, 2 * F), jnp.float32),
        "w2": xavier_uniform(ks[3], F, D),
        "b2": jnp.zeros((1, D), jnp.float32),
    }


def rope_tables():
    half = DH // 2
    inv_freq = 1.0 / (10000.0 ** (jnp.arange(half, dtype=jnp.float32) * 2.0 / DH))
    pos = jnp.arange(S, dtype=jnp.float32)
    ang = pos[:, None] * inv_freq[None, :]                        # (S, half)
    return jnp.cos(ang), jnp.sin(ang)


def pack_params(p):
    """Host-side re-layout (free plumbing): one wide (D, 5D) qkv+rot weight, rotate-half
    and 1/sqrt(head_dim) folded into weight copies, bf16 weight storage, and two
    lane-dense f32 slabs (biases/LN params, cos|sin|mask)."""
    half = DH // 2

    # rotate-half signed permutation: rot(x) = x @ M, M = [[0, I_half], [-I_half, 0]]
    M = jnp.zeros((DH, DH), jnp.float32)
    M = M.at[:half, half:].set(jnp.eye(half, dtype=jnp.float32))
    M = M.at[half:, :half].set(-jnp.eye(half, dtype=jnp.float32))
    Mblk = jnp.kron(jnp.eye(H, dtype=jnp.float32), M)             # (D, D) block-diag per head

    wq, wk, wv = p["wqkv"][:, :D], p["wqkv"][:, D:2 * D], p["wqkv"][:, 2 * D:]
    bq, bk, bv = p["bqkv"][:, :D], p["bqkv"][:, D:2 * D], p["bqkv"][:, 2 * D:]
    scale = 1.0 / math.sqrt(DH)                                   # fold 1/sqrt(head_dim) into Q
    wq, bq = wq * scale, bq * scale

    w_all = jnp.concatenate([wq, wq @ Mblk, wk, wk @ Mblk, wv], axis=-1)   # (D, 160)
    b_all = jnp.concatenate([bq, bq @ Mblk, bk, bk @ Mblk, bv], axis=-1)   # (1, 160)

    # f32 slab of all per-channel vectors (one DMA instead of eight).
    vecs = jnp.zeros((8, GW), jnp.float32)
    vecs = vecs.at[0, :D].set(p["ln1_w"][0]).at[1, :D].set(p["ln1_b"][0])
    vecs = vecs.at[2, :D].set(p["ln2_w"][0]).at[3, :D].set(p["ln2_b"][0])
    vecs = vecs.at[4, :D].set(p["bout"][0]).at[5, :D].set(p["b2"][0])
    vecs = vecs.at[6, :].set(b_all[0]).at[7, :2 * F].set(p["b1"][0])

    # cos/sin tables: halves duplicated to head_dim, tiled over batch rows and heads.
    cos, sin = rope_tables()                                      # (S, half)
    cos32 = jnp.tile(jnp.concatenate([cos, cos], axis=-1), (B, H))   # (N, D)
    sin32 = jnp.tile(jnp.concatenate([sin, sin], axis=-1), (B, H))
    # additive mask keeping attention block-diagonal over the batch dimension
    blk = jnp.arange(N, dtype=jnp.int32) // S
    mask = jnp.where(blk[:, None] == blk[None, :], 0.0, -1e30).astype(jnp.float32)

    tables = jnp.zeros((N, 128), jnp.float32)                     # lane-dense table slab
    tables = tables.at[:, 0:D].set(cos32).at[:, D:2 * D].set(sin32)
    tables = tables.at[:, 2 * D:2 * D + N].set(mask)

    return {
        "w_all": w_all.astype(jnp.bfloat16),
        "wout": p["wout"].astype(jnp.bfloat16),
        "w1": p["w1"].astype(jnp.bfloat16),
        "w2": p["w2"].astype(jnp.bfloat16),
        "vecs": vecs,
        "tables": tables,
    }


# ---------------- pure-JAX f32 reference (same math, for a sanity check) ----------------
def reference(x, p):
    cos, sin = rope_tables()

    def ln(v, w, b):
        mu = v.mean(-1, keepdims=True)
        var = ((v - mu) ** 2).mean(-1, keepdims=True)
        return (v - mu) / jnp.sqrt(var + EPS) * w + b

    def rope(t):  # t: (B, H, S, DH)
        half = DH // 2
        t1, t2 = t[..., :half], t[..., half:]
        return jnp.concatenate([t1 * cos - t2 * sin, t2 * cos + t1 * sin], axis=-1)

    y1 = ln(x, p["ln1_w"], p["ln1_b"])
    qkv = y1 @ p["wqkv"] + p["bqkv"]
    q, k, v = jnp.split(qkv, 3, axis=-1)
    split_heads = lambda t: t.reshape(B, S, H, DH).transpose(0, 2, 1, 3)
    q, k, v = split_heads(q), split_heads(k), split_heads(v)
    q, k = rope(q), rope(k)
    s = jnp.einsum("bhqd,bhkd->bhqk", q, k) / math.sqrt(DH)
    pattn = jax.nn.softmax(s, axis=-1)
    o = jnp.einsum("bhqk,bhkd->bhqd", pattn, v).transpose(0, 2, 1, 3).reshape(B, S, D)
    x2 = x + (o @ p["wout"] + p["bout"])
    y2 = ln(x2, p["ln2_w"], p["ln2_b"])
    hff = y2 @ p["w1"] + p["b1"]
    a, g = hff[..., :F], hff[..., F:]
    ff = (jax.nn.silu(a) * g) @ p["w2"] + p["b2"]
    return x2 + ff


if __name__ == "__main__":
    key = jax.random.PRNGKey(0)
    kx, kparam = jax.random.split(key)
    x = jax.random.normal(kx, (B, S, D), jnp.float32)
    params = init_params(kparam)
    packed = pack_params(params)

    out = jax.block_until_ready(transformer_encoder_layer(x, packed))
    assert out.shape == (B, S, D)

    ref = reference(x, params)
    err = float(jnp.max(jnp.abs(out - ref)))
    # bf16 MXU operands + bf16-stored weights + approx reciprocal vs. a pure-f32 reference:
    # expected drift is a few e-3; 2e-2 still catches any structural bug (>>0.1).
    assert err < 2e-2, f"max abs err {err}"

    print("KERNEL_OK")
</pallas_src>

<mosaic_0001>
module attributes {stable_mosaic.version = 11 : i64} {
  func.func @encoder_layer_kernel(%arg0: memref<16x32xf32, #tpu.memory_space<vmem>>, %arg1: memref<32x160xbf16, #tpu.memory_space<vmem>>, %arg2: memref<32x32xbf16, #tpu.memory_space<vmem>>, %arg3: memref<32x128xbf16, #tpu.memory_space<vmem>>, %arg4: memref<64x32xbf16, #tpu.memory_space<vmem>>, %arg5: memref<8x160xf32, #tpu.memory_space<vmem>>, %arg6: memref<16x128xf32, #tpu.memory_space<vmem>>, %arg7: memref<16x32xf32, #tpu.memory_space<vmem>>) attributes {dimension_semantics = [], scalar_prefetch = 0 : i64, scratch_operands = 0 : i64, tpu.core_type = #tpu.core_type<tc>} {
    %c0 = arith.constant 0 : index
    %c0_0 = arith.constant 0 : index
    %0 = vector.load %arg0[%c0, %c0_0] : memref<16x32xf32, #tpu.memory_space<vmem>>, vector<16x32xf32>
    %c0_1 = arith.constant 0 : index
    %c0_2 = arith.constant 0 : index
    %1 = vector.load %arg5[%c0_1, %c0_2] : memref<8x160xf32, #tpu.memory_space<vmem>>, vector<8x160xf32>
    %2 = vector.extract_strided_slice %1 {offsets = [0, 0], sizes = [1, 32], strides = [1, 1]} : vector<8x160xf32> to vector<1x32xf32>
    %3 = vector.extract_strided_slice %1 {offsets = [1, 0], sizes = [1, 32], strides = [1, 1]} : vector<8x160xf32> to vector<1x32xf32>
    %4 = vector.extract_strided_slice %1 {offsets = [2, 0], sizes = [1, 32], strides = [1, 1]} : vector<8x160xf32> to vector<1x32xf32>
    %5 = vector.extract_strided_slice %1 {offsets = [3, 0], sizes = [1, 32], strides = [1, 1]} : vector<8x160xf32> to vector<1x32xf32>
    %6 = vector.extract_strided_slice %1 {offsets = [4, 0], sizes = [1, 32], strides = [1, 1]} : vector<8x160xf32> to vector<1x32xf32>
    %7 = vector.extract_strided_slice %1 {offsets = [5, 0], sizes = [1, 32], strides = [1, 1]} : vector<8x160xf32> to vector<1x32xf32>
    %8 = vector.extract_strided_slice %1 {offsets = [6, 0], sizes = [1, 160], strides = [1, 1]} : vector<8x160xf32> to vector<1x160xf32>
    %9 = vector.extract_strided_slice %1 {offsets = [7, 0], sizes = [1, 128], strides = [1, 1]} : vector<8x160xf32> to vector<1x128xf32>
    %c0_3 = arith.constant 0 : index
    %c0_4 = arith.constant 0 : index
    %10 = vector.load %arg6[%c0_3, %c0_4] : memref<16x128xf32, #tpu.memory_space<vmem>>, vector<16x128xf32>
    %11 = vector.extract_strided_slice %10 {offsets = [0, 0], sizes = [16, 32], strides = [1, 1]} : vector<16x128xf32> to vector<16x32xf32>
    %12 = vector.extract_strided_slice %10 {offsets = [0, 32], sizes = [16, 32], strides = [1, 1]} : vector<16x128xf32> to vector<16x32xf32>
    %13 = vector.extract_strided_slice %10 {offsets = [0, 64], sizes = [16, 16], strides = [1, 1]} : vector<16x128xf32> to vector<16x16xf32>
    %cst = arith.constant dense<0.000000e+00> : vector<16xf32>
    %14 = vector.multi_reduction <add>, %0, %cst [1] : vector<16x32xf32> to vector<16xf32>
    %15 = vector.shape_cast %14 : vector<16xf32> to vector<16x1xf32>
    %cst_5 = arith.constant 3.200000e+01 : f32
    %16 = vector.broadcast %cst_5 : f32 to vector<16x1xf32>
    %17 = arith.divf %15, %16 : vector<16x1xf32>
    %18 = vector.broadcast %17 : vector<16x1xf32> to vector<16x32xf32>
    %19 = arith.subf %0, %18 : vector<16x32xf32>
    %20 = arith.mulf %19, %19 : vector<16x32xf32>
    %cst_6 = arith.constant dense<0.000000e+00> : vector<16xf32>
    %21 = vector.multi_reduction <add>, %20, %cst_6 [1] : vector<16x32xf32> to vector<16xf32>
    %22 = vector.shape_cast %21 : vector<16xf32> to vector<16x1xf32>
    %cst_7 = arith.constant 3.200000e+01 : f32
    %23 = vector.broadcast %cst_7 : f32 to vector<16x1xf32>
    %24 = arith.divf %22, %23 : vector<16x1xf32>
    %25 = vector.broadcast %17 : vector<16x1xf32> to vector<16x32xf32>
    %26 = arith.subf %0, %25 : vector<16x32xf32>
    %cst_8 = arith.constant 9.99999974E-6 : f32
    %27 = vector.broadcast %cst_8 : f32 to vector<16x1xf32>
    %28 = arith.addf %24, %27 : vector<16x1xf32>
    %29 = math.rsqrt %28 : vector<16x1xf32>
    %30 = vector.broadcast %29 : vector<16x1xf32> to vector<16x32xf32>
    %31 = arith.mulf %26, %30 : vector<16x32xf32>
    %32 = vector.broadcast %2 : vector<1x32xf32> to vector<16x32xf32>
    %33 = arith.mulf %31, %32 : vector<16x32xf32>
    %34 = vector.broadcast %3 : vector<1x32xf32> to vector<16x32xf32>
    %35 = arith.addf %33, %34 : vector<16x32xf32>
    %36 = arith.truncf %35 : vector<16x32xf32> to vector<16x32xbf16>
    %c0_9 = arith.constant 0 : index
    %c0_10 = arith.constant 0 : index
    %37 = vector.load %arg1[%c0_9, %c0_10] : memref<32x160xbf16, #tpu.memory_space<vmem>>, vector<32x160xbf16>
    %cst_11 = arith.constant dense<0.000000e+00> : vector<16x160xf32>
    %38 = tpu.matmul %36, %37, %cst_11 {dimension_numbers = #tpu.dot_dimension_numbers<[1], [0], [0], [1], [0, 0, 1, 1], [], []>} : vector<16x32xbf16>, vector<32x160xbf16>, vector<16x160xf32> -> vector<16x160xf32>
    %39 = vector.broadcast %8 : vector<1x160xf32> to vector<16x160xf32>
    %40 = arith.addf %38, %39 : vector<16x160xf32>
    %41 = vector.extract_strided_slice %40 {offsets = [0, 0], sizes = [16, 32], strides = [1, 1]} : vector<16x160xf32> to vector<16x32xf32>
    %42 = arith.mulf %41, %11 : vector<16x32xf32>
    %43 = vector.extract_strided_slice %40 {offsets = [0, 32], sizes = [16, 32], strides = [1, 1]} : vector<16x160xf32> to vector<16x32xf32>
    %44 = arith.mulf %43, %12 : vector<16x32xf32>
    %45 = arith.addf %42, %44 : vector<16x32xf32>
    %46 = vector.extract_strided_slice %40 {offsets = [0, 64], sizes = [16, 32], strides = [1, 1]} : vector<16x160xf32> to vector<16x32xf32>
    %47 = arith.mulf %46, %11 : vector<16x32xf32>
    %48 = vector.extract_strided_slice %40 {offsets = [0, 96], sizes = [16, 32], strides = [1, 1]} : vector<16x160xf32> to vector<16x32xf32>
    %49 = arith.mulf %48, %12 : vector<16x32xf32>
    %50 = arith.addf %47, %49 : vector<16x32xf32>
    %51 = vector.extract_strided_slice %40 {offsets = [0, 128], sizes = [16, 32], strides = [1, 1]} : vector<16x160xf32> to vector<16x32xf32>
    %52 = arith.truncf %45 : vector<16x32xf32> to vector<16x32xbf16>
    %53 = arith.truncf %50 : vector<16x32xf32> to vector<16x32xbf16>
    %54 = arith.truncf %51 : vector<16x32xf32> to vector<16x32xbf16>
    %55 = vector.extract_strided_slice %52 {offsets = [0, 0], sizes = [16, 8], strides = [1, 1]} : vector<16x32xbf16> to vector<16x8xbf16>
    %56 = vector.extract_strided_slice %53 {offsets = [0, 0], sizes = [16, 8], strides = [1, 1]} : vector<16x32xbf16> to vector<16x8xbf16>
    "tpu.trace_start"() <{level = 10 : i32, message = "nd,md->nm"}> : () -> ()
    %cst_12 = arith.constant dense<0.000000e+00> : vector<16x16xf32>
    %57 = tpu.matmul %55, %56, %cst_12 {dimension_numbers = #tpu.dot_dimension_numbers<[1], [1], [0], [0], [0, 0, 1, 0], [], []>} : vector<16x8xbf16>, vector<16x8xbf16>, vector<16x16xf32> -> vector<16x16xf32>
    "tpu.trace_stop"() : () -> ()
    %58 = arith.addf %57, %13 : vector<16x16xf32>
    %cst_13 = arith.constant dense<0xFF800000> : vector<16xf32>
    %59 = vector.multi_reduction <maximumf>, %58, %cst_13 [1] : vector<16x16xf32> to vector<16xf32>
    %60 = vector.shape_cast %59 : vector<16xf32> to vector<16x1xf32>
    %61 = vector.broadcast %60 : vector<16x1xf32> to vector<16x16xf32>
    %62 = arith.subf %58, %61 : vector<16x16xf32>
    %63 = math.exp %62 : vector<16x16xf32>
    %cst_14 = arith.constant dense<0.000000e+00> : vector<16xf32>
    %64 = vector.multi_reduction <add>, %63, %cst_14 [1] : vector<16x16xf32> to vector<16xf32>
    %65 = vector.shape_cast %64 : vector<16xf32> to vector<16x1xf32>
    %66 = tpu.reciprocal %65 {approx = true} : vector<16x1xf32> -> vector<16x1xf32>
    %67 = vector.broadcast %66 : vector<16x1xf32> to vector<16x16xf32>
    %68 = arith.mulf %63, %67 : vector<16x16xf32>
    %69 = arith.truncf %68 : vector<16x16xf32> to vector<16x16xbf16>
    %70 = vector.extract_strided_slice %54 {offsets = [0, 0], sizes = [16, 8], strides = [1, 1]} : vector<16x32xbf16> to vector<16x8xbf16>
    %cst_15 = arith.constant dense<0.000000e+00> : vector<16x8xf32>
    %71 = tpu.matmul %69, %70, %cst_15 {dimension_numbers = #tpu.dot_dimension_numbers<[1], [0], [0], [1], [0, 0, 1, 1], [], []>} : vector<16x16xbf16>, vector<16x8xbf16>, vector<16x8xf32> -> vector<16x8xf32>
    %72 = vector.extract_strided_slice %52 {offsets = [0, 8], sizes = [16, 8], strides = [1, 1]} : vector<16x32xbf16> to vector<16x8xbf16>
    %73 = vector.extract_strided_slice %53 {offsets = [0, 8], sizes = [16, 8], strides = [1, 1]} : vector<16x32xbf16> to vector<16x8xbf16>
    "tpu.trace_start"() <{level = 10 : i32, message = "nd,md->nm"}> : () -> ()
    %cst_16 = arith.constant dense<0.000000e+00> : vector<16x16xf32>
    %74 = tpu.matmul %72, %73, %cst_16 {dimension_numbers = #tpu.dot_dimension_numbers<[1], [1], [0], [0], [0, 0, 1, 0], [], []>} : vector<16x8xbf16>, vector<16x8xbf16>, vector<16x16xf32> -> vector<16x16xf32>
    "tpu.trace_stop"() : () -> ()
    %75 = arith.addf %74, %13 : vector<16x16xf32>
    %cst_17 = arith.constant dense<0xFF800000> : vector<16xf32>
    %76 = vector.multi_reduction <maximumf>, %75, %cst_17 [1] : vector<16x16xf32> to vector<16xf32>
    %77 = vector.shape_cast %76 : vector<16xf32> to vector<16x1xf32>
    %78 = vector.broadcast %77 : vector<16x1xf32> to vector<16x16xf32>
    %79 = arith.subf %75, %78 : vector<16x16xf32>
    %80 = math.exp %79 : vector<16x16xf32>
    %cst_18 = arith.constant dense<0.000000e+00> : vector<16xf32>
    %81 = vector.multi_reduction <add>, %80, %cst_18 [1] : vector<16x16xf32> to vector<16xf32>
    %82 = vector.shape_cast %81 : vector<16xf32> to vector<16x1xf32>
    %83 = tpu.reciprocal %82 {approx = true} : vector<16x1xf32> -> vector<16x1xf32>
    %84 = vector.broadcast %83 : vector<16x1xf32> to vector<16x16xf32>
    %85 = arith.mulf %80, %84 : vector<16x16xf32>
    %86 = arith.truncf %85 : vector<16x16xf32> to vector<16x16xbf16>
    %87 = vector.extract_strided_slice %54 {offsets = [0, 8], sizes = [16, 8], strides = [1, 1]} : vector<16x32xbf16> to vector<16x8xbf16>
    %cst_19 = arith.constant dense<0.000000e+00> : vector<16x8xf32>
    %88 = tpu.matmul %86, %87, %cst_19 {dimension_numbers = #tpu.dot_dimension_numbers<[1], [0], [0], [1], [0, 0, 1, 1], [], []>} : vector<16x16xbf16>, vector<16x8xbf16>, vector<16x8xf32> -> vector<16x8xf32>
    %89 = vector.extract_strided_slice %52 {offsets = [0, 16], sizes = [16, 8], strides = [1, 1]} : vector<16x32xbf16> to vector<16x8xbf16>
    %90 = vector.extract_strided_slice %53 {offsets = [0, 16], sizes = [16, 8], strides = [1, 1]} : vector<16x32xbf16> to vector<16x8xbf16>
    "tpu.trace_start"() <{level = 10 : i32, message = "nd,md->nm"}> : () -> ()
    %cst_20 = arith.constant dense<0.000000e+00> : vector<16x16xf32>
    %91 = tpu.matmul %89, %90, %cst_20 {dimension_numbers = #tpu.dot_dimension_numbers<[1], [1], [0], [0], [0, 0, 1, 0], [], []>} : vector<16x8xbf16>, vector<16x8xbf16>, vector<16x16xf32> -> vector<16x16xf32>
    "tpu.trace_stop"() : () -> ()
    %92 = arith.addf %91, %13 : vector<16x16xf32>
    %cst_21 = arith.constant dense<0xFF800000> : vector<16xf32>
    %93 = vector.multi_reduction <maximumf>, %92, %cst_21 [1] : vector<16x16xf32> to vector<16xf32>
    %94 = vector.shape_cast %93 : vector<16xf32> to vector<16x1xf32>
    %95 = vector.broadcast %94 : vector<16x1xf32> to vector<16x16xf32>
    %96 = arith.subf %92, %95 : vector<16x16xf32>
    %97 = math.exp %96 : vector<16x16xf32>
    %cst_22 = arith.constant dense<0.000000e+00> : vector<16xf32>
    %98 = vector.multi_reduction <add>, %97, %cst_22 [1] : vector<16x16xf32> to vector<16xf32>
    %99 = vector.shape_cast %98 : vector<16xf32> to vector<16x1xf32>
    %100 = tpu.reciprocal %99 {approx = true} : vector<16x1xf32> -> vector<16x1xf32>
    %101 = vector.broadcast %100 : vector<16x1xf32> to vector<16x16xf32>
    %102 = arith.mulf %97, %101 : vector<16x16xf32>
    %103 = arith.truncf %102 : vector<16x16xf32> to vector<16x16xbf16>
    %104 = vector.extract_strided_slice %54 {offsets = [0, 16], sizes = [16, 8], strides = [1, 1]} : vector<16x32xbf16> to vector<16x8xbf16>
    %cst_23 = arith.constant dense<0.000000e+00> : vector<16x8xf32>
    %105 = tpu.matmul %103, %104, %cst_23 {dimension_numbers = #tpu.dot_dimension_numbers<[1], [0], [0], [1], [0, 0, 1, 1], [], []>} : vector<16x16xbf16>, vector<16x8xbf16>, vector<16x8xf32> -> vector<16x8xf32>
    %106 = vector.extract_strided_slice %52 {offsets = [0, 24], sizes = [16, 8], strides = [1, 1]} : vector<16x32xbf16> to vector<16x8xbf16>
    %107 = vector.extract_strided_slice %53 {offsets = [0, 24], sizes = [16, 8], strides = [1, 1]} : vector<16x32xbf16> to vector<16x8xbf16>
    "tpu.trace_start"() <{level = 10 : i32, message = "nd,md->nm"}> : () -> ()
    %cst_24 = arith.constant dense<0.000000e+00> : vector<16x16xf32>
    %108 = tpu.matmul %106, %107, %cst_24 {dimension_numbers = #tpu.dot_dimension_numbers<[1], [1], [0], [0], [0, 0, 1, 0], [], []>} : vector<16x8xbf16>, vector<16x8xbf16>, vector<16x16xf32> -> vector<16x16xf32>
    "tpu.trace_stop"() : () -> ()
    %109 = arith.addf %108, %13 : vector<16x16xf32>
    %cst_25 = arith.constant dense<0xFF800000> : vector<16xf32>
    %110 = vector.multi_reduction <maximumf>, %109, %cst_25 [1] : vector<16x16xf32> to vector<16xf32>
    %111 = vector.shape_cast %110 : vector<16xf32> to vector<16x1xf32>
    %112 = vector.broadcast %111 : vector<16x1xf32> to vector<16x16xf32>
    %113 = arith.subf %109, %112 : vector<16x16xf32>
    %114 = math.exp %113 : vector<16x16xf32>
    %cst_26 = arith.constant dense<0.000000e+00> : vector<16xf32>
    %115 = vector.multi_reduction <add>, %114, %cst_26 [1] : vector<16x16xf32> to vector<16xf32>
    %116 = vector.shape_cast %115 : vector<16xf32> to vector<16x1xf32>
    %117 = tpu.reciprocal %116 {approx = true} : vector<16x1xf32> -> vector<16x1xf32>
    %118 = vector.broadcast %117 : vector<16x1xf32> to vector<16x16xf32>
    %119 = arith.mulf %114, %118 : vector<16x16xf32>
    %120 = arith.truncf %119 : vector<16x16xf32> to vector<16x16xbf16>
    %121 = vector.extract_strided_slice %54 {offsets = [0, 24], sizes = [16, 8], strides = [1, 1]} : vector<16x32xbf16> to vector<16x8xbf16>
    %cst_27 = arith.constant dense<0.000000e+00> : vector<16x8xf32>
    %122 = tpu.matmul %120, %121, %cst_27 {dimension_numbers = #tpu.dot_dimension_numbers<[1], [0], [0], [1], [0, 0, 1, 1], [], []>} : vector<16x16xbf16>, vector<16x8xbf16>, vector<16x8xf32> -> vector<16x8xf32>
    %123 = tpu.concatenate %71, %88, %105, %122 in 1 : vector<16x8xf32>, vector<16x8xf32>, vector<16x8xf32>, vector<16x8xf32> -> vector<16x32xf32>
    %124 = arith.truncf %123 : vector<16x32xf32> to vector<16x32xbf16>
    %c0_28 = arith.constant 0 : index
    %c0_29 = arith.constant 0 : index
    %125 = vector.load %arg2[%c0_28, %c0_29] : memref<32x32xbf16, #tpu.memory_space<vmem>>, vector<32x32xbf16>
    %cst_30 = arith.constant dense<0.000000e+00> : vector<16x32xf32>
    %126 = tpu.matmul %124, %125, %cst_30 {dimension_numbers = #tpu.dot_dimension_numbers<[1], [0], [0], [1], [0, 0, 1, 1], [], []>} : vector<16x32xbf16>, vector<32x32xbf16>, vector<16x32xf32> -> vector<16x32xf32>
    %127 = vector.broadcast %6 : vector<1x32xf32> to vector<16x32xf32>
    %128 = arith.addf %126, %127 : vector<16x32xf32>
    %129 = arith.addf %0, %128 : vector<16x32xf32>
    %cst_31 = arith.constant dense<0.000000e+00> : vector<16xf32>
    %130 = vector.multi_reduction <add>, %129, %cst_31 [1] : vector<16x32xf32> to vector<16xf32>
    %131 = vector.shape_cast %130 : vector<16xf32> to vector<16x1xf32>
    %cst_32 = arith.constant 3.200000e+01 : f32
    %132 = vector.broadcast %cst_32 : f32 to vector<16x1xf32>
    %133 = arith.divf %131, %132 : vector<16x1xf32>
    %134 = vector.broadcast %133 : vector<16x1xf32> to vector<16x32xf32>
    %135 = arith.subf %129, %134 : vector<16x32xf32>
    %136 = arith.mulf %135, %135 : vector<16x32xf32>
    %cst_33 = arith.constant dense<0.000000e+00> : vector<16xf32>
    %137 = vector.multi_reduction <add>, %136, %cst_33 [1] : vector<16x32xf32> to vector<16xf32>
    %138 = vector.shape_cast %137 : vector<16xf32> to vector<16x1xf32>
    %cst_34 = arith.constant 3.200000e+01 : f32
    %139 = vector.broadcast %cst_34 : f32 to vector<16x1xf32>
    %140 = arith.divf %138, %139 : vector<16x1xf32>
    %141 = vector.broadcast %133 : vector<16x1xf32> to vector<16x32xf32>
    %142 = arith.subf %129, %141 : vector<16x32xf32>
    %cst_35 = arith.constant 9.99999974E-6 : f32
    %143 = vector.broadcast %cst_35 : f32 to vector<16x1xf32>
    %144 = arith.addf %140, %143 : vector<16x1xf32>
    %145 = math.rsqrt %144 : vector<16x1xf32>
    %146 = vector.broadcast %145 : vector<16x1xf32> to vector<16x32xf32>
    %147 = arith.mulf %142, %146 : vector<16x32xf32>
    %148 = vector.broadcast %4 : vector<1x32xf32> to vector<16x32xf32>
    %149 = arith.mulf %147, %148 : vector<16x32xf32>
    %150 = vector.broadcast %5 : vector<1x32xf32> to vector<16x32xf32>
    %151 = arith.addf %149, %150 : vector<16x32xf32>
    %152 = arith.truncf %151 : vector<16x32xf32> to vector<16x32xbf16>
    %c0_36 = arith.constant 0 : index
    %c0_37 = arith.constant 0 : index
    %153 = vector.load %arg3[%c0_36, %c0_37] : memref<32x128xbf16, #tpu.memory_space<vmem>>, vector<32x128xbf16>
    %cst_38 = arith.constant dense<0.000000e+00> : vector<16x128xf32>
    %154 = tpu.matmul %152, %153, %cst_38 {dimension_numbers = #tpu.dot_dimension_numbers<[1], [0], [0], [1], [0, 0, 1, 1], [], []>} : vector<16x32xbf16>, vector<32x128xbf16>, vector<16x128xf32> -> vector<16x128xf32>
    %155 = vector.broadcast %9 : vector<1x128xf32> to vector<16x128xf32>
    %156 = arith.addf %154, %155 : vector<16x128xf32>
    %157 = vector.extract_strided_slice %156 {offsets = [0, 0], sizes = [16, 64], strides = [1, 1]} : vector<16x128xf32> to vector<16x64xf32>
    %158 = vector.extract_strided_slice %156 {offsets = [0, 64], sizes = [16, 64], strides = [1, 1]} : vector<16x128xf32> to vector<16x64xf32>
    %159 = arith.negf %157 : vector<16x64xf32>
    %160 = math.exp %159 : vector<16x64xf32>
    %cst_39 = arith.constant 1.000000e+00 : f32
    %161 = vector.broadcast %cst_39 : f32 to vector<16x64xf32>
    %162 = arith.addf %161, %160 : vector<16x64xf32>
    %163 = arith.divf %161, %162 : vector<16x64xf32>
    %164 = arith.mulf %157, %163 : vector<16x64xf32>
    %165 = arith.mulf %164, %158 : vector<16x64xf32>
    %166 = arith.truncf %165 : vector<16x64xf32> to vector<16x64xbf16>
    %c0_40 = arith.constant 0 : index
    %c0_41 = arith.constant 0 : index
    %167 = vector.load %arg4[%c0_40, %c0_41] : memref<64x32xbf16, #tpu.memory_space<vmem>>, vector<64x32xbf16>
    %cst_42 = arith.constant dense<0.000000e+00> : vector<16x32xf32>
    %168 = tpu.matmul %166, %167, %cst_42 {dimension_numbers = #tpu.dot_dimension_numbers<[1], [0], [0], [1], [0, 0, 1, 1], [], []>} : vector<16x64xbf16>, vector<64x32xbf16>, vector<16x32xf32> -> vector<16x32xf32>
    %169 = vector.broadcast %7 : vector<1x32xf32> to vector<16x32xf32>
    %170 = arith.addf %168, %169 : vector<16x32xf32>
    %171 = arith.addf %129, %170 : vector<16x32xf32>
    %c0_43 = arith.constant 0 : index
    %c0_44 = arith.constant 0 : index
    %172 = vector.load %arg7[%c0_43, %c0_44] : memref<16x32xf32, #tpu.memory_space<vmem>>, vector<16x32xf32>
    tpu.vector_store %arg7[%c0_43, %c0_44], %171 {strides = array<i32>} : memref<16x32xf32, #tpu.memory_space<vmem>>, vector<16x32xf32>,
    return
  }
}

</mosaic_0001>

<llo_original>
// kernel: transformer_encoder_layer.1
$region0: #{transformer_encoder_layer.1}
  #allocation0 [shape = 'u32[]', space=smem, size = 0x4, offset = 0x4, fixed_abs, tag = 'smem constant byte address 0x4 - core index']
  #allocation1 [shape = 'u32[144,128]{1,0:T(1,128)}', space=vmem, size = 0x12000, scoped, tag = 'internal scratch']
  %s0 = inlined_call_operand.vmem [shape: f32[16,32], index: 0, kind: input, shape index: {}]
  %s1 = inlined_call_operand.vmem [shape: bf16[32,160], index: 1, kind: input, shape index: {}]
  %s2 = inlined_call_operand.hbm [shape: bf16[32,32], index: 2, kind: input, shape index: {}]
  %s3 = inlined_call_operand.hbm [shape: bf16[32,128], index: 3, kind: input, shape index: {}]
  %s4 = inlined_call_operand.vmem [shape: bf16[64,32], index: 4, kind: input, shape index: {}]
  %s5 = inlined_call_operand.hbm [shape: f32[8,160], index: 5, kind: input, shape index: {}]
  %s6 = inlined_call_operand.hbm [shape: f32[16,128], index: 6, kind: input, shape index: {}]
  %s7 = inlined_call_operand.hbm [shape: f32[16,32], index: 7, kind: output, shape index: {}]
  %s8 = sld [smem:[#allocation0]]
  $region54: #{transformer_encoder_layer.1} parent=0
    _
  %s10 = ssub.s32 1, %s8
  %s11 = scalar_select 0, %s10, %s8
  $region1: #{transformer_encoder_layer.1} parent=0
    #allocation2 [shape = 'u8[8192]{0}', space=vmem, size = 0x2000, scoped, tag = 'input window, operand 2, single buffered']
    #allocation3 [shape = 's32[1]{0}', space=sflag, size = 0x4, scoped, tag = 'scoped memory for transformer_encoder_layer.1']
    #allocation4 [shape = 's32[1]{0}', space=sflag, size = 0x4, scoped, tag = 'scoped memory for transformer_encoder_layer.1']
    #allocation5 [shape = 'u8[8192]{0}', space=vmem, size = 0x2000, scoped, tag = 'input window, operand 3, single buffered']
    #allocation6 [shape = 's32[1]{0}', space=sflag, size = 0x4, scoped, tag = 'scoped memory for transformer_encoder_layer.1']
    #allocation7 [shape = 'u8[8192]{0}', space=vmem, size = 0x2000, scoped, tag = 'input window, operand 5, single buffered']
    #allocation8 [shape = 'u8[8192]{0}', space=vmem, size = 0x2000, scoped, tag = 'input window, operand 6, single buffered']
    #allocation9 [shape = 's32[1]{0}', space=sflag, size = 0x4, scoped, tag = 'scoped memory for transformer_encoder_layer.1']
    #allocation10 [shape = 'u8[8192]{0}', space=vmem, size = 0x2000, scoped, tag = 'output window, operand 0, single buffered']
    %12 = vsyncpa [#allocation3], 0
    %13 = vsyncpa [#allocation6], 0
    %14 = vsyncpa [#allocation9], 0
    %15 = vsyncpa [#allocation4], 0
    // Predicated region
    $region2: #{transformer_encoder_layer.1} parent=1 // pred_check
      _
    $region3: #{transformer_encoder_layer.1} parent=1 // pred_check_branch
      %17 = sbr.rel (0) target = $region5
    $region4: #{transformer_encoder_layer.1} parent=1 // pred_region
      _
    $region5: #{transformer_encoder_layer.1} parent=1 // pred_fallthru
      _
    // Predicated region
    $region6: #{transformer_encoder_layer.1} parent=1 // pred_check
      _
    $region7: #{transformer_encoder_layer.1} parent=1 // pred_check_branch
      %19 = sbr.rel (0) target = $region9
    $region8: #{transformer_encoder_layer.1} parent=1 // pred_region
      _
    $region9: #{transformer_encoder_layer.1} parent=1 // pred_fallthru
      _
    // Predicated region
    $region10: #{transformer_encoder_layer.1} parent=1 // pred_check
      _
    $region11: #{transformer_encoder_layer.1} parent=1 // pred_check_branch
      %21 = sbr.rel (0) target = $region13
    $region12: #{transformer_encoder_layer.1} parent=1 // pred_region
      %s23 = ssub.s32 256, 256
      %24 = vsyncadd [#allocation3], %s23
      %s25 = sshll.u32 [#allocation2], 4
      %s26 = int_to_ptr.vmem [resolvable:$true] %s25
      %31 = dma.hbm_to_vmem [thread:$0]  %s2, 256, %s26, [#allocation3], 64, 64, 4
    $region13: #{transformer_encoder_layer.1} parent=1 // pred_fallthru
      _
    // Predicated region
    $region14: #{transformer_encoder_layer.1} parent=1 // pred_check
      _
    $region15: #{transformer_encoder_layer.1} parent=1 // pred_check_branch
      %33 = sbr.rel (0) target = $region17
    $region16: #{transformer_encoder_layer.1} parent=1 // pred_region
      %s35 = ssub.s32 256, 256
      %36 = vsyncadd [#allocation6], %s35
      %s37 = sshll.u32 [#allocation5], 4
      %s38 = int_to_ptr.vmem [resolvable:$true] %s37
      %43 = dma.hbm_to_vmem [thread:$0]  %s3, 256, %s38, [#allocation6], 64, 64, 4
    $region17: #{transformer_encoder_layer.1} parent=1 // pred_fallthru
      _
    // Predicated region
    $region18: #{transformer_encoder_layer.1} parent=1 // pred_check
      _
    $region19: #{transformer_encoder_layer.1} parent=1 // pred_check_branch
      %45 = sbr.rel (0) target = $region21
    $region20: #{transformer_encoder_layer.1} parent=1 // pred_region
      _
    $region21: #{transformer_encoder_layer.1} parent=1 // pred_fallthru
      _
    // Predicated region
    $region22: #{transformer_encoder_layer.1} parent=1 // pred_check
      _
    $region23: #{transformer_encoder_layer.1} parent=1 // pred_check_branch
      %47 = sbr.rel (0) target = $region25
    $region24: #{transformer_encoder_layer.1} parent=1 // pred_region
      %s49 = ssub.s32 256, 256
      %50 = vsyncadd [#allocation6], %s49
      %s52 = sshll.u32 [#allocation7], 4
      %s53 = int_to_ptr.vmem [resolvable:$true] %s52
      %55 = dma.hbm_to_vmem [thread:$0]  %s5, 256, %s53, [#allocation6]
    $region25: #{transformer_encoder_layer.1} parent=1 // pred_fallthru
      _
    // Predicated region
    $region26: #{transformer_encoder_layer.1} parent=1 // pred_check
      _
    $region27: #{transformer_encoder_layer.1} parent=1 // pred_check_branch
      %57 = sbr.rel (0) target = $region29
    $region28: #{transformer_encoder_layer.1} parent=1 // pred_region
      %s59 = ssub.s32 256, 256
      %60 = vsyncadd [#allocation9], %s59
      %s61 = sshll.u32 [#allocation8], 4
      %s62 = int_to_ptr.vmem [resolvable:$true] %s61
      %67 = dma.hbm_to_vmem [thread:$0]  %s6, 256, %s62, [#allocation9], 128, 128, 8
    $region29: #{transformer_encoder_layer.1} parent=1 // pred_fallthru
      _
    // Predicated region
    $region30: #{transformer_encoder_layer.1} parent=1 // pred_check
      _
    $region31: #{transformer_encoder_layer.1} parent=1 // pred_check_branch
      %69 = sbr.rel (0) target = $region33
    $region32: #{transformer_encoder_layer.1} parent=1 // pred_region
      %70 = dma.done [#allocation3], 256
    $region33: #{transformer_encoder_layer.1} parent=1 // pred_fallthru
      _
    // Predicated region
    $region34: #{transformer_encoder_layer.1} parent=1 // pred_check
      _
    $region35: #{transformer_encoder_layer.1} parent=1 // pred_check_branch
      %72 = sbr.rel (0) target = $region37
    $region36: #{transformer_encoder_layer.1} parent=1 // pred_region
      %73 = dma.done [#allocation6], 256
    $region37: #{transformer_encoder_layer.1} parent=1 // pred_fallthru
      _
    // Predicated region
    $region38: #{transformer_encoder_layer.1} parent=1 // pred_check
      _
    $region39: #{transformer_encoder_layer.1} parent=1 // pred_check_branch
      %75 = sbr.rel (0) target = $region41
    $region40: #{transformer_encoder_layer.1} parent=1 // pred_region
      %76 = dma.done [#allocation6], 256
    $region41: #{transformer_encoder_layer.1} parent=1 // pred_fallthru
      _
    // Predicated region
    $region42: #{transformer_encoder_layer.1} parent=1 // pred_check
      _
    $region43: #{transformer_encoder_layer.1} parent=1 // pred_check_branch
      %78 = sbr.rel (0) target = $region45
    $region44: #{transformer_encoder_layer.1} parent=1 // pred_region
      %79 = dma.done [#allocation9], 256
    $region45: #{transformer_encoder_layer.1} parent=1 // pred_fallthru
      _
    %v81 = vld [vmem:[%s0] sm:$0xff]
    %v82 = vld [vmem:[%s0 + $0x8] sm:$0xff]
    %v83 = vld [vmem:[#allocation7] sm:$0xff]
    %v84 = vld [vmem:[#allocation7 + $0x8] sm:$0xff]
    %v85 = vld [vmem:[#allocation8] sm:$0xff]
    %v86 = vld [vmem:[#allocation8 + $0x8] sm:$0xff]
    %vm87 = vcmask 261120
    %v88 = vsel %vm87, %v81, 0.0
    %89 = vadd.xlane.f32.xlu0 %v88
    %v90 = vpop.xlane.xlu0 %89
    %v91 = vsel %vm87, %v82, 0.0
    %92 = vadd.xlane.f32.xlu0 %v91
    %v93 = vpop.xlane.xlu0 %92
    %v94 = vrcp.pop 32.0
    %v95 = vmul.f32 %v90, %v94
    %v96 = vmul.f32 %v93, %v94
    %v97 = vsub.f32 %v81, %v95
    %v98 = vsub.f32 %v82, %v96
    %v99 = vmul.f32 %v97, %v97
    %v100 = vmul.f32 %v98, %v98
    %v101 = vsel %vm87, %v99, 0.0
    %102 = vadd.xlane.f32.xlu0 %v101
    %v103 = vpop.xlane.xlu0 %102
    %v104 = vsel %vm87, %v100, 0.0
    %105 = vadd.xlane.f32.xlu0 %v104
    %v106 = vpop.xlane.xlu0 %105
    %v107 = vmul.f32 %v103, %v94
    %v108 = vmul.f32 %v106, %v94
    %v109 = vadd.f32 %v107, 1e-05
    %v110 = vadd.f32 %v108, 1e-05
    %v111 = vrsqrt.pop %v109
    %v112 = vrsqrt.pop %v110
    %v113 = vmul.f32 %v97, %v111
    %v114 = vmul.f32 %v98, %v112
    %v115 = vlaneseq
    %v116 = vshrl.u32 %v115, 7
    %v117 = vsub.s32 0, %v116
    %v118 = vrot.slane %v83, %v117
    %v119 = vmul.f32 %v113, %v118
    %v120 = vmul.f32 %v114, %v118
    %v121 = vlaneseq
    %v122 = vshrl.u32 %v121, 7
    %v123 = vsub.s32 1, %v122
    %v124 = vrot.slane %v83, %v123
    %v125 = vadd.f32 %v119, %v124
    %v126 = vadd.f32 %v120, %v124
    %v127 = vpack.c.bf16 %v126, %v125
    %v128 = vld [vmem:[%s1] sm:$0xff]
    %v129 = vld [vmem:[%s1 + $0x8] sm:$0xff]
    %v130 = vld [vmem:[%s1 + $0x10] sm:$0xff]
    %v131 = vld [vmem:[%s1 + $0x18] sm:$0xff]
    %v132 = vlaneseq
    %v133 = vshrl.u32 %v132, 7
    %v134 = vsub.s32 6, %v133
    %v135 = vrot.slane %v83, %v134
    %v136 = vlaneseq
    %v137 = vshrl.u32 %v136, 7
    %v138 = vsub.s32 6, %v137
    %v139 = vrot.slane %v84, %v138
    %v144 = vunpack.c.l.b16 %v128
    %v145 = vunpack.c.h.b16 %v128
    %v146 = vunpack.c.l.b16 %v129
    %v147 = vunpack.c.h.b16 %v129
    %v148 = vunpack.c.l.b16 %v130
    %v149 = vunpack.c.h.b16 %v130
    %v150 = vunpack.c.l.b16 %v131
    %v151 = vunpack.c.h.b16 %v131
    %v152 = vpack.c.b16 %v146, %v144
    %v153 = vpack.c.b16 %v147, %v145
    %v154 = vpack.c.b16 %v150, %v148
    %v155 = vpack.c.b16 %v151, %v149
    %v161 = vsel %vm87, %v127, 0
    %163 = vmatprep.subr.bf16.mxu0 0
    %164 = vmatpush1.bf16.msra.mxu0 0
    %165 = vmatprep.subr.bf16.mxu0 0
    %166 = vmatpush1.bf16.msra.mxu0 0
    %167 = vmatprep.subr.bf16.mxu0 0
    %168 = vmatpush1.bf16.msra.mxu0 0
    %169 = vmatprep.subr.bf16.mxu0 0
    %170 = vmatpush1.bf16.msra.mxu0 0
    %171 = vmatprep.subr.bf16.mxu0 0
    %172 = vmatpush1.bf16.msra.mxu0 0
    %173 = vmatprep.subr.bf16.mxu0 0
    %174 = vmatpush1.bf16.msra.mxu0 0
    %175 = vmatprep.subr.bf16.mxu0 %v155
    %176 = vmatpush1.bf16.msra.mxu0 %v154
    %177 = vmatprep.subr.bf16.mxu0 %v153
    %178 = vmatpush1.bf16.msra.mxu0 %v152
    %179 = vmatprep.subr.bf16.mxu0 0
    %180 = vmatpush2.bf16.msra.mxu0 0
    %181 = vmatprep.subr.bf16.mxu0 0
    %182 = vmatpush2.bf16.msra.mxu0 0
    %183 = vmatprep.subr.bf16.mxu0 0
    %184 = vmatpush2.bf16.msra.mxu0 0
    %185 = vmatprep.subr.bf16.mxu0 0
    %186 = vmatpush2.bf16.msra.mxu0 0
    %187 = vmatprep.subr.bf16.mxu0 0
    %188 = vmatpush2.bf16.msra.mxu0 0
    %189 = vmatprep.subr.bf16.mxu0 0
    %190 = vmatpush2.bf16.msra.mxu0 0
    %191 = vmatprep.subr.bf16.mxu0 0
    %192 = vmatpush2.bf16.msra.mxu0 0
    %193 = vmatprep.subr.bf16.mxu0 0
    %194 = vmatpush2.bf16.msra.mxu0 0
    %195 = vmatprep.mubr.bf16.mxu0 0
    %196 = vmatmul.mubr.bf16.gmra.mxu0 %v161
    %v197 = vpop.f32.mrf.mxu0
    %v198 = vadd.f32 %v135, %v197
    %v199 = vpop.f32.mrf.mxu0
    %v200 = vadd.f32 %v139, %v199
    %v201 = vpop.f32.mrf.mxu0
    %v202 = vadd.f32 %v135, %v201
    %v203 = vpop.f32.mrf.mxu0
    %v204 = vadd.f32 %v139, %v203
    %205 = vdwg.mxu0
    %v206 = vmul.f32 %v198, %v85
    %v207 = vmul.f32 %v202, %v86
    %210 = vrot.lane.b32.xlu0 %v206, 96
    %v211 = vpop.permute.xlu0 %210
    %212 = vrot.lane.b32.xlu0 %v207, 96
    %v213 = vpop.permute.xlu0 %212
    %v216 = vadd.f32 %v206, %v211
    %v217 = vadd.f32 %v207, %v213
    %220 = vrot.lane.b32.xlu0 %v85, 64
    %v221 = vpop.permute.xlu0 %220
    %222 = vrot.lane.b32.xlu0 %v86, 64
    %v223 = vpop.permute.xlu0 %222
    %v226 = vmul.f32 %v198, %v221
    %v227 = vmul.f32 %v202, %v223
    %230 = vrot.lane.b32.xlu0 %v226, 96
    %v231 = vpop.permute.xlu0 %230
    %232 = vrot.lane.b32.xlu0 %v227, 96
    %v233 = vpop.permute.xlu0 %232
    %v236 = vadd.f32 %v226, %v231
    %v237 = vadd.f32 %v227, %v233
    %v238 = vpack.c.bf16 %v217, %v216
    %v239 = vpack.c.bf16 %v237, %v236
    %v240 = vpack.c.bf16 %v204, %v200
    %242 = vrot.lane.b32.xlu0 %v239, 64
    %v243 = vpop.permute.xlu0 %242
    %vm244 = vcmask 64512
    %v246 = vsel %vm244, %v238, 0
    %v249 = vsel %vm244, %v243, 0
    %251 = vmatprep.subr.bf16.mxu0 0
    %252 = vmatpush1.bf16.xpose.msra.mxu0 0
    %253 = vmatprep.subr.bf16.mxu0 0
    %254 = vmatpush1.bf16.xpose.msra.mxu0 0
    %255 = vmatprep.subr.bf16.mxu0 0
    %256 = vmatpush1.bf16.xpose.msra.mxu0 0
    %257 = vmatprep.subr.bf16.mxu0 0
    %258 = vmatpush1.bf16.xpose.msra.mxu0 0
    %259 = vmatprep.subr.bf16.mxu0 0
    %260 = vmatpush1.bf16.xpose.msra.mxu0 0
    %261 = vmatprep.subr.bf16.mxu0 0
    %262 = vmatpush1.bf16.xpose.msra.mxu0 0
    %263 = vmatprep.subr.bf16.mxu0 0
    %264 = vmatpush1.bf16.xpose.msra.mxu0 0
    %265 = vmatprep.subr.bf16.mxu0 0
    %266 = vmatpush1.bf16.xpose.msra.mxu0 %v249
    %267 = vmatprep.subr.bf16.mxu0 0
    %268 = vmatpush2.bf16.xpose.msra.mxu0 0
    %269 = vmatprep.subr.bf16.mxu0 0
    %270 = vmatpush2.bf16.xpose.msra.mxu0 0
    %271 = vmatprep.subr.bf16.mxu0 0
    %272 = vmatpush2.bf16.xpose.msra.mxu0 0
    %273 = vmatprep.subr.bf16.mxu0 0
    %274 = vmatpush2.bf16.xpose.msra.mxu0 0
    %275 = vmatprep.subr.bf16.mxu0 0
    %276 = vmatpush2.bf16.xpose.msra.mxu0 0
    %277 = vmatprep.subr.bf16.mxu0 0
    %278 = vmatpush2.bf16.xpose.msra.mxu0 0
    %279 = vmatprep.subr.bf16.mxu0 0
    %280 = vmatpush2.bf16.xpose.msra.mxu0 0
    %281 = vmatprep.subr.bf16.mxu0 0
    %282 = vmatpush2.bf16.xpose.msra.mxu0 0
    %283 = vmatprep.mubr.bf16.mxu0 0
    %284 = vmatmul.mubr.bf16.gmra.mxu0 %v246
    %v285 = vpop.f32.mrf.mxu0
    %v286 = vadd.f32 %v221, %v285
    %v287 = vpop.f32.mrf.mxu0
    %v288 = vpop.f32.mrf.mxu0
    %v289 = vadd.f32 %v223, %v288
    %v290 = vpop.f32.mrf.mxu0
    %291 = vdwg.mxu0
    %vm292 = vcmask 130048
    %v293 = vsel %vm292, %v286, -inf
    %294 = vmax.xlane.f32.xlu0 %v293
    %v295 = vpop.xlane.xlu0 %294
    %v296 = vsel %vm292, %v289, -inf
    %297 = vmax.xlane.f32.xlu0 %v296
    %v298 = vpop.xlane.xlu0 %297
    %v299 = vsub.f32 %v286, %v295
    %v300 = vsub.f32 %v289, %v298
    %v301 = vmul.f32 %v299, 1.442695
    %v302 = vpow.pop %v301
    %v303 = vmul.f32 %v300, 1.442695
    %v304 = vpow.pop %v303
    %v305 = vsel %vm292, %v302, 0.0
    %306 = vadd.xlane.f32.xlu0 %v305
    %v307 = vpop.xlane.xlu0 %306
    %v308 = vsel %vm292, %v304, 0.0
    %309 = vadd.xlane.f32.xlu0 %v308
    %v310 = vpop.xlane.xlu0 %309
    %v311 = vrcp.pop %v307
    %v312 = vrcp.pop %v310
    %v313 = vmul.f32 %v302, %v311
    %v314 = vmul.f32 %v304, %v312
    %v315 = vpack.c.bf16 %v314, %v313
    %v317 = vsel %vm292, %v315, 0
    %319 = vmatprep.subr.bf16.mxu0 0
    %320 = vmatpush1.bf16.msra.mxu0 0
    %321 = vmatprep.subr.bf16.mxu0 0
    %322 = vmatpush1.bf16.msra.mxu0 0
    %323 = vmatprep.subr.bf16.mxu0 0
    %324 = vmatpush1.bf16.msra.mxu0 0
    %325 = vmatprep.subr.bf16.mxu0 0
    %326 = vmatpush1.bf16.msra.mxu0 0
    %327 = vmatprep.subr.bf16.mxu0 0
    %328 = vmatpush1.bf16.msra.mxu0 0
    %329 = vmatprep.subr.bf16.mxu0 0
    %330 = vmatpush1.bf16.msra.mxu0 0
    %331 = vmatprep.subr.bf16.mxu0 0
    %332 = vmatpush1.bf16.msra.mxu0 0
    %333 = vmatprep.subr.bf16.mxu0 0
    %334 = vmatpush1.bf16.msra.mxu0 %v240
    %335 = vmatprep.subr.bf16.mxu0 0
    %336 = vmatpush2.bf16.msra.mxu0 0
    %337 = vmatprep.subr.bf16.mxu0 0
    %338 = vmatpush2.bf16.msra.mxu0 0
    %339 = vmatprep.subr.bf16.mxu0 0
    %340 = vmatpush2.bf16.msra.mxu0 0
    %341 = vmatprep.subr.bf16.mxu0 0
    %342 = vmatpush2.bf16.msra.mxu0 0
    %343 = vmatprep.subr.bf16.mxu0 0
    %344 = vmatpush2.bf16.msra.mxu0 0
    %345 = vmatprep.subr.bf16.mxu0 0
    %346 = vmatpush2.bf16.msra.mxu0 0
    %347 = vmatprep.subr.bf16.mxu0 0
    %348 = vmatpush2.bf16.msra.mxu0 0
    %349 = vmatprep.subr.bf16.mxu0 0
    %350 = vmatpush2.bf16.msra.mxu0 0
    %351 = vmatprep.mubr.bf16.mxu0 0
    %352 = vmatmul.mubr.bf16.gmra.mxu0 %v317
    %v353 = vpop.f32.mrf.mxu0
    %v354 = vadd.f32 0.0, %v353
    %v355 = vpop.f32.mrf.mxu0
    %v356 = vpop.f32.mrf.mxu0
    %v357 = vadd.f32 0.0, %v356
    %v358 = vpop.f32.mrf.mxu0
    %359 = vdwg.mxu0
    %361 = vrot.lane.b32.xlu0 %v238, 120
    %v362 = vpop.permute.xlu0 %361
    %363 = vrot.lane.b32.xlu0 %v239, 56
    %v364 = vpop.permute.xlu0 %363
    %v366 = vsel %vm244, %v362, 0
    %v369 = vsel %vm244, %v364, 0
    %371 = vmatprep.subr.bf16.mxu0 0
    %372 = vmatpush1.bf16.xpose.msra.mxu0 0
    %373 = vmatprep.subr.bf16.mxu0 0
    %374 = vmatpush1.bf16.xpose.msra.mxu0 0
    %375 = vmatprep.subr.bf16.mxu0 0
    %376 = vmatpush1.bf16.xpose.msra.mxu0 0
    %377 = vmatprep.subr.bf16.mxu0 0
    %378 = vmatpush1.bf16.xpose.msra.mxu0 0
    %379 = vmatprep.subr.bf16.mxu0 0
    %380 = vmatpush1.bf16.xpose.msra.mxu0 0
    %381 = vmatprep.subr.bf16.mxu0 0
    %382 = vmatpush1.bf16.xpose.msra.mxu0 0
    %383 = vmatprep.subr.bf16.mxu0 0
    %384 = vmatpush1.bf16.xpose.msra.mxu0 0
    %385 = vmatprep.subr.bf16.mxu0 0
    %386 = vmatpush1.bf16.xpose.msra.mxu0 %v369
    %387 = vmatprep.subr.bf16.mxu0 0
    %388 = vmatpush2.bf16.xpose.msra.mxu0 0
    %389 = vmatprep.subr.bf16.mxu0 0
    %390 = vmatpush2.bf16.xpose.msra.mxu0 0
    %391 = vmatprep.subr.bf16.mxu0 0
    %392 = vmatpush2.bf16.xpose.msra.mxu0 0
    %393 = vmatprep.subr.bf16.mxu0 0
    %394 = vmatpush2.bf16.xpose.msra.mxu0 0
    %395 = vmatprep.subr.bf16.mxu0 0
    %396 = vmatpush2.bf16.xpose.msra.mxu0 0
    %397 = vmatprep.subr.bf16.mxu0 0
    %398 = vmatpush2.bf16.xpose.msra.mxu0 0
    %399 = vmatprep.subr.bf16.mxu0 0
    %400 = vmatpush2.bf16.xpose.msra.mxu0 0
    %401 = vmatprep.subr.bf16.mxu0 0
    %402 = vmatpush2.bf16.xpose.msra.mxu0 0
    %403 = vmatprep.mubr.bf16.mxu0 0
    %404 = vmatmul.mubr.bf16.gmra.mxu0 %v366
    %v405 = vpop.f32.mrf.mxu0
    %v406 = vadd.f32 %v221, %v405
    %v407 = vpop.f32.mrf.mxu0
    %v408 = vpop.f32.mrf.mxu0
    %v409 = vadd.f32 %v223, %v408
    %v410 = vpop.f32.mrf.mxu0
    %411 = vdwg.mxu0
    %v412 = vsel %vm292, %v406, -inf
    %413 = vmax.xlane.f32.xlu0 %v412
    %v414 = vpop.xlane.xlu0 %413
    %v415 = vsel %vm292, %v409, -inf
    %416 = vmax.xlane.f32.xlu0 %v415
    %v417 = vpop.xlane.xlu0 %416
    %v418 = vsub.f32 %v406, %v414
    %v419 = vsub.f32 %v409, %v417
    %v420 = vmul.f32 %v418, 1.442695
    %v421 = vpow.pop %v420
    %v422 = vmul.f32 %v419, 1.442695
    %v423 = vpow.pop %v422
    %v424 = vsel %vm292, %v421, 0.0
    %425 = vadd.xlane.f32.xlu0 %v424
    %v426 = vpop.xlane.xlu0 %425
    %v427 = vsel %vm292, %v423, 0.0
    %428 = vadd.xlane.f32.xlu0 %v427
    %v429 = vpop.xlane.xlu0 %428
    %v430 = vrcp.pop %v426
    %v431 = vrcp.pop %v429
    %v432 = vmul.f32 %v421, %v430
    %v433 = vmul.f32 %v423, %v431
    %v434 = vpack.c.bf16 %v433, %v432
    %436 = vrot.lane.b32.xlu0 %v240, 120
    %v437 = vpop.permute.xlu0 %436
    %v440 = vsel %vm292, %v434, 0
    %442 = vmatprep.subr.bf16.mxu0 0
    %443 = vmatpush1.bf16.msra.mxu0 0
    %444 = vmatprep.subr.bf16.mxu0 0
    %445 = vmatpush1.bf16.msra.mxu0 0
    %446 = vmatprep.subr.bf16.mxu0 0
    %447 = vmatpush1.bf16.msra.mxu0 0
    %448 = vmatprep.subr.bf16.mxu0 0
    %449 = vmatpush1.bf16.msra.mxu0 0
    %450 = vmatprep.subr.bf16.mxu0 0
    %451 = vmatpush1.bf16.msra.mxu0 0
    %452 = vmatprep.subr.bf16.mxu0 0
    %453 = vmatpush1.bf16.msra.mxu0 0
    %454 = vmatprep.subr.bf16.mxu0 0
    %455 = vmatpush1.bf16.msra.mxu0 0
    %456 = vmatprep.subr.bf16.mxu0 0
    %457 = vmatpush1.bf16.msra.mxu0 %v437
    %458 = vmatprep.subr.bf16.mxu0 0
    %459 = vmatpush2.bf16.msra.mxu0 0
    %460 = vmatprep.subr.bf16.mxu0 0
    %461 = vmatpush2.bf16.msra.mxu0 0
    %462 = vmatprep.subr.bf16.mxu0 0
    %463 = vmatpush2.bf16.msra.mxu0 0
    %464 = vmatprep.subr.bf16.mxu0 0
    %465 = vmatpush2.bf16.msra.mxu0 0
    %466 = vmatprep.subr.bf16.mxu0 0
    %467 = vmatpush2.bf16.msra.mxu0 0
    %468 = vmatprep.subr.bf16.mxu0 0
    %469 = vmatpush2.bf16.msra.mxu0 0
    %470 = vmatprep.subr.bf16.mxu0 0
    %471 = vmatpush2.bf16.msra.mxu0 0
    %472 = vmatprep.subr.bf16.mxu0 0
    %473 = vmatpush2.bf16.msra.mxu0 0
    %474 = vmatprep.mubr.bf16.mxu0 0
    %475 = vmatmul.mubr.bf16.gmra.mxu0 %v440
    %v476 = vpop.f32.mrf.mxu0
    %v477 = vadd.f32 0.0, %v476
    %v478 = vpop.f32.mrf.mxu0
    %v479 = vpop.f32.mrf.mxu0
    %v480 = vadd.f32 0.0, %v479
    %v481 = vpop.f32.mrf.mxu0
    %482 = vdwg.mxu0
    %483 = vrot.lane.b32.xlu0 %v238, 112
    %v484 = vpop.permute.xlu0 %483
    %485 = vrot.lane.b32.xlu0 %v239, 48
    %v486 = vpop.permute.xlu0 %485
    %v488 = vsel %vm244, %v484, 0
    %v491 = vsel %vm244, %v486, 0
    %493 = vmatprep.subr.bf16.mxu0 0
    %494 = vmatpush1.bf16.xpose.msra.mxu0 0
    %495 = vmatprep.subr.bf16.mxu0 0
    %496 = vmatpush1.bf16.xpose.msra.mxu0 0
    %497 = vmatprep.subr.bf16.mxu0 0
    %498 = vmatpush1.bf16.xpose.msra.mxu0 0
    %499 = vmatprep.subr.bf16.mxu0 0
    %500 = vmatpush1.bf16.xpose.msra.mxu0 0
    %501 = vmatprep.subr.bf16.mxu0 0
    %502 = vmatpush1.bf16.xpose.msra.mxu0 0
    %503 = vmatprep.subr.bf16.mxu0 0
    %504 = vmatpush1.bf16.xpose.msra.mxu0 0
    %505 = vmatprep.subr.bf16.mxu0 0
    %506 = vmatpush1.bf16.xpose.msra.mxu0 0
    %507 = vmatprep.subr.bf16.mxu0 0
    %508 = vmatpush1.bf16.xpose.msra.mxu0 %v491
    %509 = vmatprep.subr.bf16.mxu0 0
    %510 = vmatpush2.bf16.xpose.msra.mxu0 0
    %511 = vmatprep.subr.bf16.mxu0 0
    %512 = vmatpush2.bf16.xpose.msra.mxu0 0
    %513 = vmatprep.subr.bf16.mxu0 0
    %514 = vmatpush2.bf16.xpose.msra.mxu0 0
    %515 = vmatprep.subr.bf16.mxu0 0
    %516 = vmatpush2.bf16.xpose.msra.mxu0 0
    %517 = vmatprep.subr.bf16.mxu0 0
    %518 = vmatpush2.bf16.xpose.msra.mxu0 0
    %519 = vmatprep.subr.bf16.mxu0 0
    %520 = vmatpush2.bf16.xpose.msra.mxu0 0
    %521 = vmatprep.subr.bf16.mxu0 0
    %522 = vmatpush2.bf16.xpose.msra.mxu0 0
    %523 = vmatprep.subr.bf16.mxu0 0
    %524 = vmatpush2.bf16.xpose.msra.mxu0 0
    %525 = vmatprep.mubr.bf16.mxu0 0
    %526 = vmatmul.mubr.bf16.gmra.mxu0 %v488
    %v527 = vpop.f32.mrf.mxu0
    %v528 = vadd.f32 %v221, %v527
    %v529 = vpop.f32.mrf.mxu0
    %v530 = vpop.f32.mrf.mxu0
    %v531 = vadd.f32 %v223, %v530
    %v532 = vpop.f32.mrf.mxu0
    %533 = vdwg.mxu0
    %v534 = vsel %vm292, %v528, -inf
    %535 = vmax.xlane.f32.xlu0 %v534
    %v536 = vpop.xlane.xlu0 %535
    %v537 = vsel %vm292, %v531, -inf
    %538 = vmax.xlane.f32.xlu0 %v537
    %v539 = vpop.xlane.xlu0 %538
    %v540 = vsub.f32 %v528, %v536
    %v541 = vsub.f32 %v531, %v539
    %v542 = vmul.f32 %v540, 1.442695
    %v543 = vpow.pop %v542
    %v544 = vmul.f32 %v541, 1.442695
    %v545 = vpow.pop %v544
    %v546 = vsel %vm292, %v543, 0.0
    %547 = vadd.xlane.f32.xlu0 %v546
    %v548 = vpop.xlane.xlu0 %547
    %v549 = vsel %vm292, %v545, 0.0
    %550 = vadd.xlane.f32.xlu0 %v549
    %v551 = vpop.xlane.xlu0 %550
    %v552 = vrcp.pop %v548
    %v553 = vrcp.pop %v551
    %v554 = vmul.f32 %v543, %v552
    %v555 = vmul.f32 %v545, %v553
    %v556 = vpack.c.bf16 %v555, %v554
    %557 = vrot.lane.b32.xlu0 %v240, 112
    %v558 = vpop.permute.xlu0 %557
    %v561 = vsel %vm292, %v556, 0
    %563 = vmatprep.subr.bf16.mxu0 0
    %564 = vmatpush1.bf16.msra.mxu0 0
    %565 = vmatprep.subr.bf16.mxu0 0
    %566 = vmatpush1.bf16.msra.mxu0 0
    %567 = vmatprep.subr.bf16.mxu0 0
    %568 = vmatpush1.bf16.msra.mxu0 0
    %569 = vmatprep.subr.bf16.mxu0 0
    %570 = vmatpush1.bf16.msra.mxu0 0
    %571 = vmatprep.subr.bf16.mxu0 0
    %572 = vmatpush1.bf16.msra.mxu0 0
    %573 = vmatprep.subr.bf16.mxu0 0
    %574 = vmatpush1.bf16.msra.mxu0 0
    %575 = vmatprep.subr.bf16.mxu0 0
    %576 = vmatpush1.bf16.msra.mxu0 0
    %577 = vmatprep.subr.bf16.mxu0 0
    %578 = vmatpush1.bf16.msra.mxu0 %v558
    %579 = vmatprep.subr.bf16.mxu0 0
    %580 = vmatpush2.bf16.msra.mxu0 0
    %581 = vmatprep.subr.bf16.mxu0 0
    %582 = vmatpush2.bf16.msra.mxu0 0
    %583 = vmatprep.subr.bf16.mxu0 0
    %584 = vmatpush2.bf16.msra.mxu0 0
    %585 = vmatprep.subr.bf16.mxu0 0
    %586 = vmatpush2.bf16.msra.mxu0 0
    %587 = vmatprep.subr.bf16.mxu0 0
    %588 = vmatpush2.bf16.msra.mxu0 0
    %589 = vmatprep.subr.bf16.mxu0 0
    %590 = vmatpush2.bf16.msra.mxu0 0
    %591 = vmatprep.subr.bf16.mxu0 0
    %592 = vmatpush2.bf16.msra.mxu0 0
    %593 = vmatprep.subr.bf16.mxu0 0
    %594 = vmatpush2.bf16.msra.mxu0 0
    %595 = vmatprep.mubr.bf16.mxu0 0
    %596 = vmatmul.mubr.bf16.gmra.mxu0 %v561
    %v597 = vpop.f32.mrf.mxu0
    %v598 = vadd.f32 0.0, %v597
    %v599 = vpop.f32.mrf.mxu0
    %v600 = vpop.f32.mrf.mxu0
    %v601 = vadd.f32 0.0, %v600
    %v602 = vpop.f32.mrf.mxu0
    %603 = vdwg.mxu0
    %604 = vrot.lane.b32.xlu0 %v238, 104
    %v605 = vpop.permute.xlu0 %604
    %606 = vrot.lane.b32.xlu0 %v239, 40
    %v607 = vpop.permute.xlu0 %606
    %v609 = vsel %vm244, %v605, 0
    %v612 = vsel %vm244, %v607, 0
    %614 = vmatprep.subr.bf16.mxu0 0
    %615 = vmatpush1.bf16.xpose.msra.mxu0 0
    %616 = vmatprep.subr.bf16.mxu0 0
    %617 = vmatpush1.bf16.xpose.msra.mxu0 0
    %618 = vmatprep.subr.bf16.mxu0 0
    %619 = vmatpush1.bf16.xpose.msra.mxu0 0
    %620 = vmatprep.subr.bf16.mxu0 0
    %621 = vmatpush1.bf16.xpose.msra.mxu0 0
    %622 = vmatprep.subr.bf16.mxu0 0
    %623 = vmatpush1.bf16.xpose.msra.mxu0 0
    %624 = vmatprep.subr.bf16.mxu0 0
    %625 = vmatpush1.bf16.xpose.msra.mxu0 0
    %626 = vmatprep.subr.bf16.mxu0 0
    %627 = vmatpush1.bf16.xpose.msra.mxu0 0
    %628 = vmatprep.subr.bf16.mxu0 0
    %629 = vmatpush1.bf16.xpose.msra.mxu0 %v612
    %630 = vmatprep.subr.bf16.mxu0 0
    %631 = vmatpush2.bf16.xpose.msra.mxu0 0
    %632 = vmatprep.subr.bf16.mxu0 0
    %633 = vmatpush2.bf16.xpose.msra.mxu0 0
    %634 = vmatprep.subr.bf16.mxu0 0
    %635 = vmatpush2.bf16.xpose.msra.mxu0 0
    %636 = vmatprep.subr.bf16.mxu0 0
    %637 = vmatpush2.bf16.xpose.msra.mxu0 0
    %638 = vmatprep.subr.bf16.mxu0 0
    %639 = vmatpush2.bf16.xpose.msra.mxu0 0
    %640 = vmatprep.subr.bf16.mxu0 0
    %641 = vmatpush2.bf16.xpose.msra.mxu0 0
    %642 = vmatprep.subr.bf16.mxu0 0
    %643 = vmatpush2.bf16.xpose.msra.mxu0 0
    %644 = vmatprep.subr.bf16.mxu0 0
    %645 = vmatpush2.bf16.xpose.msra.mxu0 0
    %646 = vmatprep.mubr.bf16.mxu0 0
    %647 = vmatmul.mubr.bf16.gmra.mxu0 %v609
    %v648 = vpop.f32.mrf.mxu0
    %v649 = vadd.f32 %v221, %v648
    %v650 = vpop.f32.mrf.mxu0
    %v651 = vpop.f32.mrf.mxu0
    %v652 = vadd.f32 %v223, %v651
    %v653 = vpop.f32.mrf.mxu0
    %654 = vdwg.mxu0
    %v655 = vsel %vm292, %v649, -inf
    %656 = vmax.xlane.f32.xlu0 %v655
    %v657 = vpop.xlane.xlu0 %656
    %v658 = vsel %vm292, %v652, -inf
    %659 = vmax.xlane.f32.xlu0 %v658
    %v660 = vpop.xlane.xlu0 %659
    %v661 = vsub.f32 %v649, %v657
    %v662 = vsub.f32 %v652, %v660
    %v663 = vmul.f32 %v661, 1.442695
    %v664 = vpow.pop %v663
    %v665 = vmul.f32 %v662, 1.442695
    %v666 = vpow.pop %v665
    %v667 = vsel %vm292, %v664, 0.0
    %668 = vadd.xlane.f32.xlu0 %v667
    %v669 = vpop.xlane.xlu0 %668
    %v670 = vsel %vm292, %v666, 0.0
    %671 = vadd.xlane.f32.xlu0 %v670
    %v672 = vpop.xlane.xlu0 %671
    %v673 = vrcp.pop %v669
    %v674 = vrcp.pop %v672
    %v675 = vmul.f32 %v664, %v673
    %v676 = vmul.f32 %v666, %v674
    %v677 = vpack.c.bf16 %v676, %v675
    %678 = vrot.lane.b32.xlu0 %v240, 104
    %v679 = vpop.permute.xlu0 %678
    %v682 = vsel %vm292, %v677, 0
    %684 = vmatprep.subr.bf16.mxu0 0
    %685 = vmatpush1.bf16.msra.mxu0 0
    %686 = vmatprep.subr.bf16.mxu0 0
    %687 = vmatpush1.bf16.msra.mxu0 0
    %688 = vmatprep.subr.bf16.mxu0 0
    %689 = vmatpush1.bf16.msra.mxu0 0
    %690 = vmatprep.subr.bf16.mxu0 0
    %691 = vmatpush1.bf16.msra.mxu0 0
    %692 = vmatprep.subr.bf16.mxu0 0
    %693 = vmatpush1.bf16.msra.mxu0 0
    %694 = vmatprep.subr.bf16.mxu0 0
    %695 = vmatpush1.bf16.msra.mxu0 0
    %696 = vmatprep.subr.bf16.mxu0 0
    %697 = vmatpush1.bf16.msra.mxu0 0
    %698 = vmatprep.subr.bf16.mxu0 0
    %699 = vmatpush1.bf16.msra.mxu0 %v679
    %700 = vmatprep.subr.bf16.mxu0 0
    %701 = vmatpush2.bf16.msra.mxu0 0
    %702 = vmatprep.subr.bf16.mxu0 0
    %703 = vmatpush2.bf16.msra.mxu0 0
    %704 = vmatprep.subr.bf16.mxu0 0
    %705 = vmatpush2.bf16.msra.mxu0 0
    %706 = vmatprep.subr.bf16.mxu0 0
    %707 = vmatpush2.bf16.msra.mxu0 0
    %708 = vmatprep.subr.bf16.mxu0 0
    %709 = vmatpush2.bf16.msra.mxu0 0
    %710 = vmatprep.subr.bf16.mxu0 0
    %711 = vmatpush2.bf16.msra.mxu0 0
    %712 = vmatprep.subr.bf16.mxu0 0
    %713 = vmatpush2.bf16.msra.mxu0 0
    %714 = vmatprep.subr.bf16.mxu0 0
    %715 = vmatpush2.bf16.msra.mxu0 0
    %716 = vmatprep.mubr.bf16.mxu0 0
    %717 = vmatmul.mubr.bf16.gmra.mxu0 %v682
    %v718 = vpop.f32.mrf.mxu0
    %v719 = vadd.f32 0.0, %v718
    %v720 = vpop.f32.mrf.mxu0
    %v721 = vpop.f32.mrf.mxu0
    %v722 = vadd.f32 0.0, %v721
    %v723 = vpop.f32.mrf.mxu0
    %724 = vdwg.mxu0
    %727 = vrot.lane.b32.xlu0 %v477, 8
    %v728 = vpop.permute.xlu0 %727
    %729 = vrot.lane.b32.xlu0 %v480, 8
    %v730 = vpop.permute.xlu0 %729
    %735 = vrot.lane.b32.xlu0 %v598, 16
    %v736 = vpop.permute.xlu0 %735
    %737 = vrot.lane.b32.xlu0 %v601, 16
    %v738 = vpop.permute.xlu0 %737
    %743 = vrot.lane.b32.xlu0 %v719, 24
    %v744 = vpop.permute.xlu0 %743
    %745 = vrot.lane.b32.xlu0 %v722, 24
    %v746 = vpop.permute.xlu0 %745
    %v749 = vsel %vm244, %v354, %v728
    %v750 = vsel %vm244, %v357, %v730
    %v751 = vsel %vm292, %v749, %v736
    %v752 = vsel %vm292, %v750, %v738
    %vm753 = vcmask 195584
    %v754 = vsel %vm753, %v751, %v744
    %v755 = vsel %vm753, %v752, %v746
    %v756 = vpack.c.bf16 %v755, %v754
    %v757 = vld [vmem:[#allocation2] sm:$0xf]
    %v758 = vld [vmem:[#allocation2 + $0x4] sm:$0xf]
    %v759 = vld [vmem:[#allocation2 + $0x8] sm:$0xf]
    %v760 = vld [vmem:[#allocation2 + $0xc] sm:$0xf]
    %v761 = vlaneseq
    %v762 = vshrl.u32 %v761, 7
    %v763 = vsub.s32 4, %v762
    %v764 = vrot.slane %v83, %v763
    %v769 = vunpack.c.l.b16 %v757
    %v770 = vunpack.c.l.b16 %v758
    %v771 = vunpack.c.l.b16 %v759
    %v772 = vunpack.c.l.b16 %v760
    %v773 = vpack.c.b16 %v770, %v769
    %v774 = vpack.c.b16 %v772, %v771
    %v778 = vsel %vm87, %v756, 0
    %780 = vmatprep.subr.bf16.mxu0 0
    %781 = vmatpush1.bf16.msra.mxu0 0
    %782 = vmatprep.subr.bf16.mxu0 0
    %783 = vmatpush1.bf16.msra.mxu0 0
    %784 = vmatprep.subr.bf16.mxu0 0
    %785 = vmatpush1.bf16.msra.mxu0 0
    %786 = vmatprep.subr.bf16.mxu0 0
    %787 = vmatpush1.bf16.msra.mxu0 0
    %788 = vmatprep.subr.bf16.mxu0 0
    %789 = vmatpush1.bf16.msra.mxu0 0
    %790 = vmatprep.subr.bf16.mxu0 0
    %791 = vmatpush1.bf16.msra.mxu0 0
    %792 = vmatprep.subr.bf16.mxu0 0
    %793 = vmatpush1.bf16.msra.mxu0 %v774
    %794 = vmatprep.subr.bf16.mxu0 0
    %795 = vmatpush1.bf16.msra.mxu0 %v773
    %796 = vmatprep.subr.bf16.mxu0 0
    %797 = vmatpush2.bf16.msra.mxu0 0
    %798 = vmatprep.subr.bf16.mxu0 0
    %799 = vmatpush2.bf16.msra.mxu0 0
    %800 = vmatprep.subr.bf16.mxu0 0
    %801 = vmatpush2.bf16.msra.mxu0 0
    %802 = vmatprep.subr.bf16.mxu0 0
    %803 = vmatpush2.bf16.msra.mxu0 0
    %804 = vmatprep.subr.bf16.mxu0 0
    %805 = vmatpush2.bf16.msra.mxu0 0
    %806 = vmatprep.subr.bf16.mxu0 0
    %807 = vmatpush2.bf16.msra.mxu0 0
    %808 = vmatprep.subr.bf16.mxu0 0
    %809 = vmatpush2.bf16.msra.mxu0 0
    %810 = vmatprep.subr.bf16.mxu0 0
    %811 = vmatpush2.bf16.msra.mxu0 0
    %812 = vmatprep.mubr.bf16.mxu0 0
    %813 = vmatmul.mubr.bf16.gmra.mxu0 %v778
    %v814 = vpop.f32.mrf.mxu0
    %v815 = vadd.f32 %v764, %v814
    %v816 = vpop.f32.mrf.mxu0
    %v817 = vpop.f32.mrf.mxu0
    %v818 = vadd.f32 %v764, %v817
    %v819 = vpop.f32.mrf.mxu0
    %820 = vdwg.mxu0
    %v821 = vadd.f32 %v81, %v815
    %v822 = vadd.f32 %v82, %v818
    %v823 = vsel %vm87, %v821, 0.0
    %824 = vadd.xlane.f32.xlu0 %v823
    %v825 = vpop.xlane.xlu0 %824
    %v826 = vsel %vm87, %v822, 0.0
    %827 = vadd.xlane.f32.xlu0 %v826
    %v828 = vpop.xlane.xlu0 %827
    %v829 = vmul.f32 %v825, %v94
    %v830 = vmul.f32 %v828, %v94
    %v831 = vsub.f32 %v821, %v829
    %v832 = vsub.f32 %v822, %v830
    %v833 = vmul.f32 %v831, %v831
    %v834 = vmul.f32 %v832, %v832
    %v835 = vsel %vm87, %v833, 0.0
    %836 = vadd.xlane.f32.xlu0 %v835
    %v837 = vpop.xlane.xlu0 %836
    %v838 = vsel %vm87, %v834, 0.0
    %839 = vadd.xlane.f32.xlu0 %v838
    %v840 = vpop.xlane.xlu0 %839
    %v841 = vmul.f32 %v837, %v94
    %v842 = vmul.f32 %v840, %v94
    %v843 = vadd.f32 %v841, 1e-05
    %v844 = vadd.f32 %v842, 1e-05
    %v845 = vrsqrt.pop %v843
    %v846 = vrsqrt.pop %v844
    %v847 = vmul.f32 %v831, %v845
    %v848 = vmul.f32 %v832, %v846
    %v849 = vlaneseq
    %v850 = vshrl.u32 %v849, 7
    %v851 = vsub.s32 2, %v850
    %v852 = vrot.slane %v83, %v851
    %v853 = vmul.f32 %v847, %v852
    %v854 = vmul.f32 %v848, %v852
    %v855 = vlaneseq
    %v856 = vshrl.u32 %v855, 7
    %v857 = vsub.s32 3, %v856
    %v858 = vrot.slane %v83, %v857
    %v859 = vadd.f32 %v853, %v858
    %v860 = vadd.f32 %v854, %v858
    %v861 = vpack.c.bf16 %v860, %v859
    %v862 = vld [vmem:[#allocation5] sm:$0xf]
    %v863 = vld [vmem:[#allocation5 + $0x4] sm:$0xf]
    %v864 = vld [vmem:[#allocation5 + $0x8] sm:$0xf]
    %v865 = vld [vmem:[#allocation5 + $0xc] sm:$0xf]
    %v866 = vlaneseq
    %v867 = vshrl.u32 %v866, 7
    %v868 = vsub.s32 7, %v867
    %v869 = vrot.slane %v83, %v868
    %v874 = vunpack.c.l.b16 %v862
    %v875 = vunpack.c.l.b16 %v863
    %v876 = vunpack.c.l.b16 %v864
    %v877 = vunpack.c.l.b16 %v865
    %v878 = vpack.c.b16 %v875, %v874
    %v879 = vpack.c.b16 %v877, %v876
    %v883 = vsel %vm87, %v861, 0
    %885 = vmatprep.subr.bf16.mxu0 0
    %886 = vmatpush1.bf16.msra.mxu0 0
    %887 = vmatprep.subr.bf16.mxu0 0
    %888 = vmatpush1.bf16.msra.mxu0 0
    %889 = vmatprep.subr.bf16.mxu0 0
    %890 = vmatpush1.bf16.msra.mxu0 0
    %891 = vmatprep.subr.bf16.mxu0 0
    %892 = vmatpush1.bf16.msra.mxu0 0
    %893 = vmatprep.subr.bf16.mxu0 0
    %894 = vmatpush1.bf16.msra.mxu0 0
    %895 = vmatprep.subr.bf16.mxu0 0
    %896 = vmatpush1.bf16.msra.mxu0 0
    %897 = vmatprep.subr.bf16.mxu0 0
    %898 = vmatpush1.bf16.msra.mxu0 %v879
    %899 = vmatprep.subr.bf16.mxu0 0
    %900 = vmatpush1.bf16.msra.mxu0 %v878
    %901 = vmatprep.subr.bf16.mxu0 0
    %902 = vmatpush2.bf16.msra.mxu0 0
    %903 = vmatprep.subr.bf16.mxu0 0
    %904 = vmatpush2.bf16.msra.mxu0 0
    %905 = vmatprep.subr.bf16.mxu0 0
    %906 = vmatpush2.bf16.msra.mxu0 0
    %907 = vmatprep.subr.bf16.mxu0 0
    %908 = vmatpush2.bf16.msra.mxu0 0
    %909 = vmatprep.subr.bf16.mxu0 0
    %910 = vmatpush2.bf16.msra.mxu0 0
    %911 = vmatprep.subr.bf16.mxu0 0
    %912 = vmatpush2.bf16.msra.mxu0 0
    %913 = vmatprep.subr.bf16.mxu0 0
    %914 = vmatpush2.bf16.msra.mxu0 0
    %915 = vmatprep.subr.bf16.mxu0 0
    %916 = vmatpush2.bf16.msra.mxu0 0
    %917 = vmatprep.mubr.bf16.mxu0 0
    %918 = vmatmul.mubr.bf16.gmra.mxu0 %v883
    %v919 = vpop.f32.mrf.mxu0
    %v920 = vadd.f32 %v869, %v919
    %v921 = vpop.f32.mrf.mxu0
    %v922 = vpop.f32.mrf.mxu0
    %v923 = vadd.f32 %v869, %v922
    %v924 = vpop.f32.mrf.mxu0
    %925 = vdwg.mxu0
    %v926 = vxor.u32 %v920, 2147483648
    %v927 = vxor.u32 %v923, 2147483648
    %v928 = vmul.f32 %v926, 1.442695
    %v929 = vpow.pop %v928
    %v930 = vmul.f32 %v927, 1.442695
    %v931 = vpow.pop %v930
    %v932 = vadd.f32 %v929, 1.0
    %v933 = vadd.f32 %v931, 1.0
    %v934 = vrcp.pop %v932
    %v935 = vmul.f32 1.0, %v934
    %v936 = vrcp.pop %v933
    %v937 = vmul.f32 1.0, %v936
    %v938 = vmul.f32 %v920, %v935
    %v939 = vmul.f32 %v923, %v937
    %942 = vrot.lane.b32.xlu0 %v920, 64
    %v943 = vpop.permute.xlu0 %942
    %944 = vrot.lane.b32.xlu0 %v923, 64
    %v945 = vpop.permute.xlu0 %944
    %v948 = vmul.f32 %v938, %v943
    %v949 = vmul.f32 %v939, %v945
    %v950 = vpack.c.bf16 %v949, %v948
    %v951 = vld [vmem:[%s4] sm:$0xf]
    %v952 = vld [vmem:[%s4 + $0x4] sm:$0xf]
    %v953 = vld [vmem:[%s4 + $0x8] sm:$0xf]
    %v954 = vld [vmem:[%s4 + $0xc] sm:$0xf]
    %v955 = vld [vmem:[%s4 + $0x10] sm:$0xf]
    %v956 = vld [vmem:[%s4 + $0x14] sm:$0xf]
    %v957 = vld [vmem:[%s4 + $0x18] sm:$0xf]
    %v958 = vld [vmem:[%s4 + $0x1c] sm:$0xf]
    %v959 = vlaneseq
    %v960 = vshrl.u32 %v959, 7
    %v961 = vsub.s32 5, %v960
    %v962 = vrot.slane %v83, %v961
    %v971 = vunpack.c.l.b16 %v951
    %v972 = vunpack.c.l.b16 %v952
    %v973 = vunpack.c.l.b16 %v953
    %v974 = vunpack.c.l.b16 %v954
    %v975 = vunpack.c.l.b16 %v955
    %v976 = vunpack.c.l.b16 %v956
    %v977 = vunpack.c.l.b16 %v957
    %v978 = vunpack.c.l.b16 %v958
    %v979 = vpack.c.b16 %v972, %v971
    %v980 = vpack.c.b16 %v974, %v973
    %v981 = vpack.c.b16 %v976, %v975
    %v982 = vpack.c.b16 %v978, %v977
    %vm987 = vcmask 523264
    %v989 = vsel %vm987, %v950, 0
    %991 = vmatprep.subr.bf16.mxu0 0
    %992 = vmatpush1.bf16.msra.mxu0 0
    %993 = vmatprep.subr.bf16.mxu0 0
    %994 = vmatpush1.bf16.msra.mxu0 0
    %995 = vmatprep.subr.bf16.mxu0 0
    %996 = vmatpush1.bf16.msra.mxu0 0
    %997 = vmatprep.subr.bf16.mxu0 0
    %998 = vmatpush1.bf16.msra.mxu0 0
    %999 = vmatprep.subr.bf16.mxu0 0
    %1000 = vmatpush1.bf16.msra.mxu0 %v982
    %1001 = vmatprep.subr.bf16.mxu0 0
    %1002 = vmatpush1.bf16.msra.mxu0 %v981
    %1003 = vmatprep.subr.bf16.mxu0 0
    %1004 = vmatpush1.bf16.msra.mxu0 %v980
    %1005 = vmatprep.subr.bf16.mxu0 0
    %1006 = vmatpush1.bf16.msra.mxu0 %v979
    %1007 = vmatprep.subr.bf16.mxu0 0
    %1008 = vmatpush2.bf16.msra.mxu0 0
    %1009 = vmatprep.subr.bf16.mxu0 0
    %1010 = vmatpush2.bf16.msra.mxu0 0
    %1011 = vmatprep.subr.bf16.mxu0 0
    %1012 = vmatpush2.bf16.msra.mxu0 0
    %1013 = vmatprep.subr.bf16.mxu0 0
    %1014 = vmatpush2.bf16.msra.mxu0 0
    %1015 = vmatprep.subr.bf16.mxu0 0
    %1016 = vmatpush2.bf16.msra.mxu0 0
    %1017 = vmatprep.subr.bf16.mxu0 0
    %1018 = vmatpush2.bf16.msra.mxu0 0
    %1019 = vmatprep.subr.bf16.mxu0 0
    %1020 = vmatpush2.bf16.msra.mxu0 0
    %1021 = vmatprep.subr.bf16.mxu0 0
    %1022 = vmatpush2.bf16.msra.mxu0 0
    %1023 = vmatprep.mubr.bf16.mxu0 0
    %1024 = vmatmul.mubr.bf16.gmra.mxu0 %v989
    %v1025 = vpop.f32.mrf.mxu0
    %v1026 = vadd.f32 %v962, %v1025
    %v1027 = vpop.f32.mrf.mxu0
    %v1028 = vpop.f32.mrf.mxu0
    %v1029 = vadd.f32 %v962, %v1028
    %v1030 = vpop.f32.mrf.mxu0
    %1031 = vdwg.mxu0
    %v1032 = vadd.f32 %v821, %v1026
    %v1033 = vadd.f32 %v822, %v1029
    %1034 = vst.msk [vmem:[#allocation10] sm:$0xff] %vm87, %v1032
    %1035 = vst.msk [vmem:[#allocation10 + $0x8] sm:$0xff] %vm87, %v1033
    // Predicated region
    $region46: #{transformer_encoder_layer.1} parent=1 // pred_check
      _
    $region47: #{transformer_encoder_layer.1} parent=1 // pred_check_branch
      %1037 = sbr.rel (0) target = $region49
    $region48: #{transformer_encoder_layer.1} parent=1 // pred_region
      %s1039 = ssub.s32 256, 256
      %1040 = vsyncadd [#allocation4], %s1039
      %s1041 = sshll.u32 [#allocation10], 4
      %s1042 = int_to_ptr.vmem [resolvable:$true] %s1041
      %1047 = dma.vmem_to_hbm [thread:$0]  %s1042, 256, %s7, [#allocation4], 128, 128, 8
    $region49: #{transformer_encoder_layer.1} parent=1 // pred_fallthru
      _
    // Predicated region
    $region50: #{transformer_encoder_layer.1} parent=1 // pred_check
      _
    $region51: #{transformer_encoder_layer.1} parent=1 // pred_check_branch
      %1049 = sbr.rel (0) target = $region53
    $region52: #{transformer_encoder_layer.1} parent=1 // pred_region
      %1050 = dma.done [#allocation4], 256
    $region53: #{transformer_encoder_layer.1} parent=1 // pred_fallthru
      _
    %1051 = vsyncpa [#allocation3], 1
    %1052 = vsyncpa [#allocation6], 1
    %1053 = vsyncpa [#allocation9], 1
    %1054 = vsyncpa [#allocation4], 1

</llo_original>
